<compile_context>
chip_gen: v6e
topology: v6e:2x2x1
jax: 0.10.0
libtpu: 0.0.40
codegen_flags: <defaults>
</compile_context>

<pallas_src>
import functools

import jax
import jax.numpy as jnp
from jax.experimental import pallas as pl
from jax.experimental.pallas import tpu as pltpu


# 2 f32 (tm, 1) scratch accumulators + 2 output pipeline buffers, each
# lane-padded to 128 lanes -> 512 B per row each.
_SMALL_BUF_BYTES_PER_ROW = 4 * 512


def _dice_kernel(pred_ref, target_ref, out_ref, inter_acc, sums_acc, *,
                 smooth, tl, l, mask_cols):
    k = pl.program_id(1)

    @pl.when(k == 0)
    def _init():
        inter_acc[...] = jnp.zeros_like(inter_acc)
        sums_acc[...] = jnp.zeros_like(sums_acc)

    p = pred_ref[...].astype(jnp.float32)
    t = target_ref[...].astype(jnp.float32)

    # Zero out padded columns of ragged edge tiles along the reduction axis.
    # Padded *rows* only affect their own output rows (discarded by the
    # wrapper's per_row[:m] slice), so no row mask is emitted.
    if mask_cols:
        col_ids = k * tl + jax.lax.broadcasted_iota(jnp.int32, p.shape, 1)
        valid = col_ids < l
        p = jnp.where(valid, p, 0.0)
        t = jnp.where(valid, t, 0.0)

    # Two cross-lane reductions per tile: intersection and the fused p+t sum.
    inter_acc[...] += jnp.sum(p * t, axis=-1, keepdims=True)
    sums_acc[...] += jnp.sum(p + t, axis=-1, keepdims=True)

    @pl.when(k == pl.num_programs(1) - 1)
    def _finalize():
        num = 2.0 * inter_acc[...] + smooth
        den = sums_acc[...] + smooth
        out_ref[...] = 1.0 - num / den


def _vmem_budget_bytes():
    """(budget_for_pipelined_blocks, physical_vmem_capacity)."""
    try:
        cap = int(pltpu.get_tpu_info().vmem_capacity_bytes)
    except Exception:
        cap = 64 * 1024 * 1024  # conservative (v7x per-TC VMEM)
    # Pipelined blocks may use up to half of VMEM: 32 MiB on v7x (64 MiB/TC),
    # capped at 32 MiB on v5e/v6e (128 MiB) where bigger tiles buy nothing at
    # their lower HBM bandwidth.
    budget = max(8 * 1024 * 1024, min(cap // 2, 32 * 1024 * 1024))
    return budget, cap


def _choose_tiles(m, l, itemsize, budget_bytes):
    """Pick (tm, tl, n_buf) so all pipelined VMEM buffers fit the budget."""
    sub = 8 * max(1, 4 // itemsize)   # sublane packing: 8 f32, 16 bf16, 32 int8
    lane = 128

    # Preferred path: whole reduction axis L in one block (single k step).
    # Per-row cost: 2 inputs x 2 pipeline buffers + the lane-padded small bufs.
    per_row = 2 * 2 * itemsize * l + _SMALL_BUF_BYTES_PER_ROW
    tm_cap = (budget_bytes // per_row) // sub * sub
    if tm_cap >= sub:
        if tm_cap >= m:
            if m <= sub:
                return m, l, 2        # too few rows to split the parallel axis
            # Split the parallel row axis into >= 2 tiles so both v7x
            # TensorCores engage and pipeline stages overlap.
            tm = pl.cdiv(pl.cdiv(m, 2), sub) * sub
            return tm, l, 2
        return tm_cap, l, 2           # already >= 2 row tiles

    # L too large for even a sub-row full-L block: tile the reduction axis
    # and triple-buffer the (small) input tiles to hide DMA issue latency.
    n_buf = 3
    tm = sub if m > sub else m
    tl_cap = (budget_bytes - _SMALL_BUF_BYTES_PER_ROW * tm) // (
        2 * n_buf * itemsize * tm)
    tl = max(lane, (tl_cap // lane) * lane)
    tl = min(tl, pl.cdiv(l, lane) * lane)
    return tm, tl, n_buf


def _make_input_spec(tm, tl, n_buf):
    index_map = lambda i, k: (i, k)
    if n_buf > 2:
        try:
            return pl.BlockSpec((tm, tl), index_map,
                                pipeline_mode=pl.Buffered(n_buf))
        except TypeError:
            pass  # older jax without pipeline_mode: fall back to 2-deep
    return pl.BlockSpec((tm, tl), index_map)


def dice_loss(pred: jax.Array, target: jax.Array, smooth: float = 1.0,
              _force_tiles=None) -> jax.Array:
    """pred, target: (N, C, H, W). Returns scalar float32 dice loss."""
    assert pred.shape == target.shape and pred.ndim == 4
    n, c, h, w = pred.shape
    m = n * c
    l = h * w

    pred2 = pred.reshape(m, l)
    target2 = target.reshape(m, l)
    itemsize = jnp.dtype(pred2.dtype).itemsize

    budget, vmem_cap = _vmem_budget_bytes()
    if _force_tiles is not None:      # test hook: exercise tiled/masked paths
        tm, tl = _force_tiles
    else:
        tm, tl, _ = _choose_tiles(m, l, itemsize, budget)

    n_row = pl.cdiv(m, tm)
    n_col = pl.cdiv(l, tl)
    mask_cols = (l % tl) != 0
    n_buf = 3 if n_col > 1 else 2     # triple-buffer only on the tiled-L path

    # Input blocks (n_buf-deep) + lane-padded (tm,1) scratch/output + headroom.
    block_bytes = 2 * n_buf * tm * tl * itemsize + _SMALL_BUF_BYTES_PER_ROW * tm
    vmem_limit = int(min(max(block_bytes + (8 << 20), 16 << 20), vmem_cap))

    kernel = functools.partial(
        _dice_kernel, smooth=float(smooth), tl=tl, l=l, mask_cols=mask_cols)

    per_row = pl.pallas_call(
        kernel,
        out_shape=jax.ShapeDtypeStruct((n_row * tm, 1), jnp.float32),
        grid_spec=pltpu.PrefetchScalarGridSpec(
            num_scalar_prefetch=0,
            grid=(n_row, n_col),
            in_specs=[
                _make_input_spec(tm, tl, n_buf),
                _make_input_spec(tm, tl, n_buf),
            ],
            out_specs=pl.BlockSpec((tm, 1), lambda i, k: (i, 0)),
            scratch_shapes=[
                pltpu.VMEM((tm, 1), jnp.float32),   # running intersection
                pltpu.VMEM((tm, 1), jnp.float32),   # running sum(p) + sum(t)
            ],
        ),
        compiler_params=pltpu.CompilerParams(
            dimension_semantics=("parallel", "arbitrary"),
            vmem_limit_bytes=vmem_limit,
        ),
    )(pred2, target2)

    # Final mean over the true (non-padded) rows.  Padded rows of a ragged
    # last row tile may hold garbage (no row mask), so the [:m] slice here is
    # load-bearing.
    return jnp.mean(per_row[:m, 0])


def _reference_dice_loss(pred, target, smooth=1.0):
    inter = (pred * target).sum(axis=2).sum(axis=2)
    loss = 1.0 - (2.0 * inter + smooth) / (
        pred.sum(axis=2).sum(axis=2) + target.sum(axis=2).sum(axis=2) + smooth
    )
    return loss.mean()


if __name__ == "__main__":
    key = jax.random.PRNGKey(0)
    k1, k2 = jax.random.split(key)

    # Case 1: typical small shape; whole problem in a single block.
    N, C, H, W = 2, 4, 16, 16
    pred = jax.nn.sigmoid(jax.random.normal(k1, (N, C, H, W), dtype=jnp.float32))
    target = (jax.random.uniform(k2, (N, C, H, W)) > 0.5).astype(jnp.float32)
    out = jax.block_until_ready(dice_loss(pred, target, smooth=1.0))
    ref = _reference_dice_loss(pred, target, smooth=1.0)
    assert jnp.allclose(out, ref, rtol=1e-5, atol=1e-5), (out, ref)

    # Case 2: larger M -> automatic row-axis split (n_row >= 2 "parallel"
    # tiles, so megacore sharding / pipeline overlap can engage).
    N1, C1, H1, W1 = 4, 8, 16, 16
    p1 = jax.nn.sigmoid(jax.random.normal(k1, (N1, C1, H1, W1), dtype=jnp.float32))
    t1 = (jax.random.uniform(k2, (N1, C1, H1, W1)) > 0.5).astype(jnp.float32)
    out1 = jax.block_until_ready(dice_loss(p1, t1, smooth=1.0))
    ref1 = _reference_dice_loss(p1, t1, smooth=1.0)
    assert jnp.allclose(out1, ref1, rtol=1e-5, atol=1e-5), (out1, ref1)

    # Case 3: ragged M and L with forced small tiles -- exercises the tiled
    # reduction axis, column masking, triple-buffered inputs, and the
    # discarded padded output rows.
    N2, C2, H2, W2 = 3, 3, 20, 20
    p2 = jax.nn.sigmoid(jax.random.normal(k1, (N2, C2, H2, W2), dtype=jnp.float32))
    t2 = (jax.random.uniform(k2, (N2, C2, H2, W2)) > 0.5).astype(jnp.float32)
    out2 = jax.block_until_ready(
        dice_loss(p2, t2, smooth=1.0, _force_tiles=(8, 128)))
    ref2 = _reference_dice_loss(p2, t2, smooth=1.0)
    assert jnp.allclose(out2, ref2, rtol=1e-5, atol=1e-5), (out2, ref2)

    print("KERNEL_OK")
</pallas_src>

<mosaic_0001>
module attributes {stable_mosaic.version = 11 : i64} {
  func.func @_dice_kernel(%arg0: i32, %arg1: i32, %arg2: memref<8x256xf32, #tpu.memory_space<vmem>>, %arg3: memref<8x256xf32, #tpu.memory_space<vmem>>, %arg4: memref<8x1xf32, #tpu.memory_space<vmem>>, %arg5: memref<8x1xf32, #tpu.memory_space<vmem>>, %arg6: memref<8x1xf32, #tpu.memory_space<vmem>>) attributes {dimension_semantics = [#tpu.dimension_semantics<parallel>, #tpu.dimension_semantics<arbitrary>], iteration_bounds = array<i64: 1, 1>, scalar_prefetch = 0 : i64, scratch_operands = 2 : i64, tpu.core_type = #tpu.core_type<tc>, window_params = [{transform_indices = @transform_0, window_bounds = array<i64: 8, 256>}, {transform_indices = @transform_1, window_bounds = array<i64: 8, 256>}, {transform_indices = @transform_2, window_bounds = array<i64: 8, 1>}]} {
    %c0_i32 = arith.constant 0 : i32
    %0 = arith.cmpi eq, %arg1, %c0_i32 : i32
    %1 = arith.extui %0 : i1 to i32
    %c0_i32_0 = arith.constant 0 : i32
    %2 = arith.cmpi ne, %1, %c0_i32_0 : i32
    scf.if %2 {
      %cst_15 = arith.constant 0.000000e+00 : f32
      %20 = vector.broadcast %cst_15 : f32 to vector<8x1xf32>
      %c0_16 = arith.constant 0 : index
      %c0_17 = arith.constant 0 : index
      %21 = vector.load %arg5[%c0_16, %c0_17] : memref<8x1xf32, #tpu.memory_space<vmem>>, vector<8x1xf32>
      tpu.vector_store %arg5[%c0_16, %c0_17], %20 {strides = array<i32>} : memref<8x1xf32, #tpu.memory_space<vmem>>, vector<8x1xf32>,
      %cst_18 = arith.constant 0.000000e+00 : f32
      %22 = vector.broadcast %cst_18 : f32 to vector<8x1xf32>
      %c0_19 = arith.constant 0 : index
      %c0_20 = arith.constant 0 : index
      %23 = vector.load %arg6[%c0_19, %c0_20] : memref<8x1xf32, #tpu.memory_space<vmem>>, vector<8x1xf32>
      tpu.vector_store %arg6[%c0_19, %c0_20], %22 {strides = array<i32>} : memref<8x1xf32, #tpu.memory_space<vmem>>, vector<8x1xf32>,
    } else {
    }
    %c0 = arith.constant 0 : index
    %c0_1 = arith.constant 0 : index
    %3 = vector.load %arg2[%c0, %c0_1] : memref<8x256xf32, #tpu.memory_space<vmem>>, vector<8x256xf32>
    %c0_2 = arith.constant 0 : index
    %c0_3 = arith.constant 0 : index
    %4 = vector.load %arg3[%c0_2, %c0_3] : memref<8x256xf32, #tpu.memory_space<vmem>>, vector<8x256xf32>
    %c0_4 = arith.constant 0 : index
    %c0_5 = arith.constant 0 : index
    %5 = vector.load %arg5[%c0_4, %c0_5] : memref<8x1xf32, #tpu.memory_space<vmem>>, vector<8x1xf32>
    %6 = arith.mulf %3, %4 : vector<8x256xf32>
    %cst = arith.constant dense<0.000000e+00> : vector<8xf32>
    %7 = vector.multi_reduction <add>, %6, %cst [1] : vector<8x256xf32> to vector<8xf32>
    %8 = vector.shape_cast %7 : vector<8xf32> to vector<8x1xf32>
    %9 = arith.addf %5, %8 : vector<8x1xf32>
    %c0_6 = arith.constant 0 : index
    %c0_7 = arith.constant 0 : index
    %10 = vector.load %arg5[%c0_6, %c0_7] : memref<8x1xf32, #tpu.memory_space<vmem>>, vector<8x1xf32>
    tpu.vector_store %arg5[%c0_6, %c0_7], %9 {strides = array<i32>} : memref<8x1xf32, #tpu.memory_space<vmem>>, vector<8x1xf32>,
    %c0_8 = arith.constant 0 : index
    %c0_9 = arith.constant 0 : index
    %11 = vector.load %arg6[%c0_8, %c0_9] : memref<8x1xf32, #tpu.memory_space<vmem>>, vector<8x1xf32>
    %12 = arith.addf %3, %4 : vector<8x256xf32>
    %cst_10 = arith.constant dense<0.000000e+00> : vector<8xf32>
    %13 = vector.multi_reduction <add>, %12, %cst_10 [1] : vector<8x256xf32> to vector<8xf32>
    %14 = vector.shape_cast %13 : vector<8xf32> to vector<8x1xf32>
    %15 = arith.addf %11, %14 : vector<8x1xf32>
    %c0_11 = arith.constant 0 : index
    %c0_12 = arith.constant 0 : index
    %16 = vector.load %arg6[%c0_11, %c0_12] : memref<8x1xf32, #tpu.memory_space<vmem>>, vector<8x1xf32>
    tpu.vector_store %arg6[%c0_11, %c0_12], %15 {strides = array<i32>} : memref<8x1xf32, #tpu.memory_space<vmem>>, vector<8x1xf32>,
    %c0_i32_13 = arith.constant 0 : i32
    %17 = arith.cmpi eq, %arg1, %c0_i32_13 : i32
    %18 = arith.extui %17 : i1 to i32
    %c0_i32_14 = arith.constant 0 : i32
    %19 = arith.cmpi ne, %18, %c0_i32_14 : i32
    scf.if %19 {
      %c0_15 = arith.constant 0 : index
      %c0_16 = arith.constant 0 : index
      %20 = vector.load %arg5[%c0_15, %c0_16] : memref<8x1xf32, #tpu.memory_space<vmem>>, vector<8x1xf32>
      %cst_17 = arith.constant 2.000000e+00 : f32
      %21 = vector.broadcast %cst_17 : f32 to vector<8x1xf32>
      %22 = arith.mulf %21, %20 : vector<8x1xf32>
      %cst_18 = arith.constant 1.000000e+00 : f32
      %23 = vector.broadcast %cst_18 : f32 to vector<8x1xf32>
      %24 = arith.addf %22, %23 : vector<8x1xf32>
      %c0_19 = arith.constant 0 : index
      %c0_20 = arith.constant 0 : index
      %25 = vector.load %arg6[%c0_19, %c0_20] : memref<8x1xf32, #tpu.memory_space<vmem>>, vector<8x1xf32>
      %cst_21 = arith.constant 1.000000e+00 : f32
      %26 = vector.broadcast %cst_21 : f32 to vector<8x1xf32>
      %27 = arith.addf %25, %26 : vector<8x1xf32>
      %28 = arith.divf %24, %27 : vector<8x1xf32>
      %cst_22 = arith.constant 1.000000e+00 : f32
      %29 = vector.broadcast %cst_22 : f32 to vector<8x1xf32>
      %30 = arith.subf %29, %28 : vector<8x1xf32>
      %c0_23 = arith.constant 0 : index
      %c0_24 = arith.constant 0 : index
      %31 = vector.load %arg4[%c0_23, %c0_24] : memref<8x1xf32, #tpu.memory_space<vmem>>, vector<8x1xf32>
      tpu.vector_store %arg4[%c0_23, %c0_24], %30 {strides = array<i32>} : memref<8x1xf32, #tpu.memory_space<vmem>>, vector<8x1xf32>,
    } else {
    }
    return
  }
  func.func @transform_0(%arg0: i32, %arg1: i32) -> (i32, i32) {
    %c0_i32 = arith.constant 0 : i32
    return %arg0, %arg1 : i32, i32
  }
  func.func @transform_1(%arg0: i32, %arg1: i32) -> (i32, i32) {
    %c0_i32 = arith.constant 0 : i32
    return %arg0, %arg1 : i32, i32
  }
  func.func @transform_2(%arg0: i32, %arg1: i32) -> (i32, i32) {
    %c0_i32 = arith.constant 0 : i32
    %c0_i32_0 = arith.constant 0 : i32
    return %arg0, %c0_i32 : i32, i32
  }
}

</mosaic_0001>

<llo_original>
// kernel: tpu_custom_call.1
$region0: #{tpu_custom_call.1}
  #allocation0 [shape = 'u32[]', space=smem, size = 0x4, offset = 0x4, fixed_abs, tag = 'smem constant byte address 0x4 - core index']
  #allocation1 [shape = 'u32[144,128]{1,0:T(1,128)}', space=vmem, size = 0x12000, scoped, tag = 'internal scratch']
  #allocation2 [shape = 'f32[8,1]{1,0:T(8,128)}', space=vmem, size = 0x1000, scoped, tag = 'scratch operand']
  #allocation3 [shape = 'f32[8,1]{1,0:T(8,128)}', space=vmem, size = 0x1000, scoped, tag = 'scratch operand']
  %s0 = inlined_call_operand.hbm [shape: f32[8,256], index: 0, kind: input, shape index: {}]
  %s1 = inlined_call_operand.hbm [shape: f32[8,256], index: 1, kind: input, shape index: {}]
  %s2 = inlined_call_operand.vmem [shape: f32[8,1], index: 2, kind: output, shape index: {}]
  %s3 = sld [smem:[#allocation0]]
  $region34: #{tpu_custom_call.1} parent=0
    _
  %s5 = ssub.s32 1, %s3
  %s6 = scalar_select 0, %s5, %s3
  $region1: #{tpu_custom_call.1} parent=0
    #allocation4 [shape = 'u8[8192]{0}', space=vmem, size = 0x2000, scoped, tag = 'input window, operand 0, single buffered']
    #allocation5 [shape = 's32[1]{0}', space=sflag, size = 0x4, scoped, tag = 'scoped memory for tpu_custom_call.1']
    #allocation6 [shape = 'u8[8192]{0}', space=vmem, size = 0x2000, scoped, tag = 'input window, operand 1, single buffered']
    #allocation7 [shape = 's32[1]{0}', space=sflag, size = 0x4, scoped, tag = 'scoped memory for tpu_custom_call.1']
    %7 = vsyncpa [#allocation5], 0
    %8 = vsyncpa [#allocation7], 0
    // Predicated region
    $region2: #{tpu_custom_call.1} parent=1 // pred_check
      _
    $region3: #{tpu_custom_call.1} parent=1 // pred_check_branch
      %10 = sbr.rel (0) target = $region5
    $region4: #{tpu_custom_call.1} parent=1 // pred_region
      %s12 = ssub.s32 256, 256
      %13 = vsyncadd [#allocation5], %s12
      %s15 = sshll.u32 [#allocation4], 4
      %s16 = int_to_ptr.vmem [resolvable:$true] %s15
      %18 = dma.hbm_to_vmem [thread:$0]  %s0, 256, %s16, [#allocation5]
    $region5: #{tpu_custom_call.1} parent=1 // pred_fallthru
      _
    // Predicated region
    $region6: #{tpu_custom_call.1} parent=1 // pred_check
      _
    $region7: #{tpu_custom_call.1} parent=1 // pred_check_branch
      %20 = sbr.rel (0) target = $region9
    $region8: #{tpu_custom_call.1} parent=1 // pred_region
      %s22 = ssub.s32 256, 256
      %23 = vsyncadd [#allocation7], %s22
      %s25 = sshll.u32 [#allocation6], 4
      %s26 = int_to_ptr.vmem [resolvable:$true] %s25
      %28 = dma.hbm_to_vmem [thread:$0]  %s1, 256, %s26, [#allocation7]
    $region9: #{tpu_custom_call.1} parent=1 // pred_fallthru
      _
    // Predicated region
    $region10: #{tpu_custom_call.1} parent=1 // pred_check
      _
    $region11: #{tpu_custom_call.1} parent=1 // pred_check_branch
      %30 = sbr.rel (0) target = $region13
    $region12: #{tpu_custom_call.1} parent=1 // pred_region
      %31 = dma.done [#allocation5], 256
    $region13: #{tpu_custom_call.1} parent=1 // pred_fallthru
      _
    // Predicated region
    $region14: #{tpu_custom_call.1} parent=1 // pred_check
      _
    $region15: #{tpu_custom_call.1} parent=1 // pred_check_branch
      %33 = sbr.rel (0) target = $region17
    $region16: #{tpu_custom_call.1} parent=1 // pred_region
      %34 = dma.done [#allocation7], 256
    $region17: #{tpu_custom_call.1} parent=1 // pred_fallthru
      _
    %p35 = scmp.eq.s32.totalorder 0, 0
    // Predicated region
    $region18: #{tpu_custom_call.1} parent=1 // pred_check
      %p36 = pneg %p35
    $region19: #{tpu_custom_call.1} parent=1 // pred_check_branch
      %38 = sbr.rel (%p36) target = $region21
    $region20: #{tpu_custom_call.1} parent=1 // pred_region
      %vm39 = vcmask 7168
      %40 = vst.msk [vmem:[#allocation2] sm:$0xff] %vm39, 0.0
      %41 = vst.msk [vmem:[#allocation3] sm:$0xff] %vm39, 0.0
    $region21: #{tpu_custom_call.1} parent=1 // pred_fallthru
      _
    %v42 = vld [vmem:[#allocation4] sm:$0xff]
    %v43 = vld [vmem:[#allocation4 + $0x8] sm:$0xff]
    %v44 = vld [vmem:[#allocation6] sm:$0xff]
    %v45 = vld [vmem:[#allocation6 + $0x8] sm:$0xff]
    %v46 = vld [vmem:[#allocation2] sm:$0xff]
    %v47 = vmul.f32 %v42, %v44
    %v48 = vmul.f32 %v43, %v45
    %v49 = vadd.f32 %v47, %v48
    %50 = vadd.xlane.f32.xlu0 %v49
    %v51 = vpop.xlane.xlu0 %50
    %v52 = vadd.f32 %v46, %v51
    %vm53 = vcmask 7168
    %54 = vst.msk [vmem:[#allocation2] sm:$0xff] %vm53, %v52
    %v55 = vld [vmem:[#allocation3] sm:$0xff]
    %v56 = vadd.f32 %v42, %v44
    %v57 = vadd.f32 %v43, %v45
    %v58 = vadd.f32 %v56, %v57
    %59 = vadd.xlane.f32.xlu0 %v58
    %v60 = vpop.xlane.xlu0 %59
    %v61 = vadd.f32 %v55, %v60
    %62 = vst.msk [vmem:[#allocation3] sm:$0xff] %vm53, %v61
    // Predicated region
    $region22: #{tpu_custom_call.1} parent=1 // pred_check
      %p63 = pneg %p35
    $region23: #{tpu_custom_call.1} parent=1 // pred_check_branch
      %65 = sbr.rel (%p63) target = $region25
    $region24: #{tpu_custom_call.1} parent=1 // pred_region
      %v66 = vld [vmem:[#allocation2] sm:$0xff]
      %v67 = vmul.f32 %v66, 2.0
      %v68 = vadd.f32 %v67, 1.0
      %v69 = vld [vmem:[#allocation3] sm:$0xff]
      %v70 = vadd.f32 %v69, 1.0
      %v71 = vrcp.pop %v70
      %v72 = vmul.f32 %v68, %v71
      %v73 = vsub.f32 1.0, %v72
      %74 = vst.msk [vmem:[%s2] sm:$0xff] %vm53, %v73
    $region25: #{tpu_custom_call.1} parent=1 // pred_fallthru
      _
    // Predicated region
    $region26: #{tpu_custom_call.1} parent=1 // pred_check
      _
    $region27: #{tpu_custom_call.1} parent=1 // pred_check_branch
      %76 = sbr.rel (0) target = $region29
    $region28: #{tpu_custom_call.1} parent=1 // pred_region
      _
    $region29: #{tpu_custom_call.1} parent=1 // pred_fallthru
      _
    // Predicated region
    $region30: #{tpu_custom_call.1} parent=1 // pred_check
      _
    $region31: #{tpu_custom_call.1} parent=1 // pred_check_branch
      %78 = sbr.rel (0) target = $region33
    $region32: #{tpu_custom_call.1} parent=1 // pred_region
      _
    $region33: #{tpu_custom_call.1} parent=1 // pred_fallthru
      _
    %79 = vsyncpa [#allocation5], 1
    %80 = vsyncpa [#allocation7], 1

</llo_original>
